<compile_context>
chip_gen: v6e
topology: v6e:2x2x1
jax: 0.10.0
libtpu: 0.0.40
codegen_flags: <defaults>
</compile_context>

<pallas_src>
import jax
import jax.numpy as jnp
from jax.experimental import pallas as pl
from jax.experimental.pallas import tpu as pltpu


def _round_up(x, m):
    return ((x + m - 1) // m) * m


# ----------------------------------------------------------------------------
# Fused kernel: per-batch-tile token MLP (prologue) + soft alignment.
# ----------------------------------------------------------------------------
def _attend_ff_kernel(s1_ref, s2_ref, w1_ref, b1_ref, w2_ref, b2_ref,
                      m1r_ref, m1c_ref, m2r_ref, m2c_ref,
                      alphas_ref, betas_ref):
    # s1_ref/s2_ref:       (TB, L, Ep)
    # w1_ref: (Ep, Hp)  b1_ref: (1, Hp)  w2_ref: (Hp, Hp)  b2_ref: (1, Hp)
    # m1r_ref/m2r_ref:     (TB, 1, L)   m1c_ref/m2c_ref: (TB, L, 1)
    # alphas_ref/betas_ref:(TB, L, Ep)
    tb, l, ep = s1_ref.shape
    hp = w1_ref.shape[1]

    w1 = w1_ref[...]
    b1 = b1_ref[...]
    w2 = w2_ref[...]
    b2 = b2_ref[...]

    def mlp(x):  # (tb*l, ep) -> (tb*l, hp); rows fused so the MXU sees TB*L rows
        h = jnp.dot(x, w1, preferred_element_type=jnp.float32) + b1
        h = jnp.maximum(h, 0.0)
        h = jnp.dot(h, w2, preferred_element_type=jnp.float32) + b2
        return jnp.maximum(h, 0.0)

    s1 = s1_ref[...]
    s2 = s2_ref[...]
    h1 = mlp(s1.reshape(tb * l, ep)).reshape(tb, l, hp)
    h2 = mlp(s2.reshape(tb * l, ep)).reshape(tb, l, hp)

    # e[b,i,j] = <h1[b,i], h2[b,j]>; computed ONCE on the MXU, transposed on the
    # XLU so both softmaxes reduce over the minor (lane) axis.
    e = jnp.einsum('bik,bjk->bij', h1, h2,
                   preferred_element_type=jnp.float32)   # (TB, LA, LB)
    et = jnp.swapaxes(e, 1, 2)                           # (TB, LB, LA), XLU

    # e_alpha: mask over LA (multiplicative, as in the reference), softmax over LA.
    ea_t = et * m1r_ref[...]
    ea_t = jnp.exp(ea_t - jnp.max(ea_t, axis=2, keepdims=True))
    ea_t = ea_t * pl.reciprocal(jnp.sum(ea_t, axis=2, keepdims=True), approx=True)

    # e_beta: mask over LB, softmax over LB.
    eb = e * m2r_ref[...]
    eb = jnp.exp(eb - jnp.max(eb, axis=2, keepdims=True))
    eb = eb * pl.reciprocal(jnp.sum(eb, axis=2, keepdims=True), approx=True)

    # alphas[b,j,:] = sum_i e_alpha[b,i,j] * s1[b,i,:]
    alphas = jnp.einsum('bji,bie->bje', ea_t, s1,
                        preferred_element_type=jnp.float32)
    alphas_ref[...] = alphas * m2c_ref[...]

    # betas[b,i,:] = sum_j e_beta[b,i,j] * s2[b,j,:]
    betas = jnp.einsum('bij,bje->bie', eb, s2,
                       preferred_element_type=jnp.float32)
    betas_ref[...] = betas * m1c_ref[...]


def _pick_tb(batch, seq_len, ep, hp, vmem_budget_bytes=16 * 1024 * 1024):
    """Batch tile: large enough to amortize per-step overhead, small enough that
    the per-step working set fits a conservative VMEM budget and the grid has
    >=2 steps (v7x has 2 TensorCores; a 1-step 'parallel' grid idles one)."""
    per_b = 4 * (2 * (2 * seq_len * ep)      # s1, s2 input tiles, double-buffered
                 + 2 * (2 * seq_len * ep)    # alphas, betas output tiles, dbl-buffered
                 + 2 * seq_len * hp          # h1, h2 intermediates
                 + 4 * seq_len * seq_len)    # e, e^T, e_alpha, e_beta
    tb_mem = max(1, vmem_budget_bytes // per_b)
    tb_par = max(1, batch // 4)              # >=4 grid steps when batch allows
    return int(min(8, tb_mem, tb_par))


# ----------------------------------------------------------------------------
# Wrapper mirroring AttendFeedForward.forward (eval mode).
# ----------------------------------------------------------------------------
def attend_feedforward(s1, s2, mask1, mask2, params):
    """s1/s2: (B, L, E) f32; mask1/mask2: (B, L) f32. Returns (alphas, betas)."""
    w1, b1, w2, b2 = params          # (E, H), (1, H), (H, H), (1, H)  == torch W.T
    B, L, E = s1.shape
    H = w1.shape[1]

    Ep = _round_up(E, 128)
    Hp = _round_up(H, 128)
    # NOTE(v6e/v7x): if H > 128 and the kernel turns compute-bound (e.g. after
    # switching operands to bf16), prefer Hp = round_up(H, 256) to fill the
    # 256-wide MXU. Irrelevant while HBM-bound, so keep 128 here.

    TB = _pick_tb(B, L, Ep, Hp)
    Bp = _round_up(B, TB)

    # Pad exactly once; zero padding keeps results exact and is sliced off at
    # the end. Skip pads that would be no-ops.
    def pad3(x, b_tgt, d_tgt):
        pb, pd = b_tgt - x.shape[0], d_tgt - x.shape[2]
        return jnp.pad(x, ((0, pb), (0, 0), (0, pd))) if (pb or pd) else x

    s1p = pad3(s1, Bp, Ep)
    s2p = pad3(s2, Bp, Ep)

    m1 = jnp.pad(mask1, ((0, Bp - B), (0, 0))) if Bp != B else mask1
    m2 = jnp.pad(mask2, ((0, Bp - B), (0, 0))) if Bp != B else mask2
    m1r = m1.reshape(Bp, 1, L)
    m1c = m1.reshape(Bp, L, 1)
    m2r = m2.reshape(Bp, 1, L)
    m2c = m2.reshape(Bp, L, 1)

    # Zero-pad weights to lane-dense shapes; padded rows/cols contribute exact 0.
    w1p = jnp.pad(w1, ((0, Ep - E), (0, Hp - H))) if (Ep != E or Hp != H) else w1
    b1p = jnp.pad(b1, ((0, 0), (0, Hp - H))) if Hp != H else b1
    w2p = jnp.pad(w2, ((0, Hp - H), (0, Hp - H))) if Hp != H else w2
    b2p = jnp.pad(b2, ((0, 0), (0, Hp - H))) if Hp != H else b2

    bspec = lambda shape: pl.BlockSpec(shape, lambda b: (b, 0, 0))   # batch-tiled
    cspec = lambda shape: pl.BlockSpec(shape, lambda b: (0, 0))      # VMEM-resident

    alphas_p, betas_p = pl.pallas_call(
        _attend_ff_kernel,
        out_shape=(jax.ShapeDtypeStruct((Bp, L, Ep), jnp.float32),
                   jax.ShapeDtypeStruct((Bp, L, Ep), jnp.float32)),
        grid_spec=pltpu.PrefetchScalarGridSpec(
            num_scalar_prefetch=0,
            grid=(Bp // TB,),
            in_specs=[
                bspec((TB, L, Ep)),        # s1
                bspec((TB, L, Ep)),        # s2
                cspec((Ep, Hp)),           # w1 (constant index_map -> stays in VMEM)
                cspec((1, Hp)),            # b1
                cspec((Hp, Hp)),           # w2
                cspec((1, Hp)),            # b2
                bspec((TB, 1, L)),         # mask1 row form (for e_alpha logits)
                bspec((TB, L, 1)),         # mask1 col form (for betas output)
                bspec((TB, 1, L)),         # mask2 row form (for e_beta logits)
                bspec((TB, L, 1)),         # mask2 col form (for alphas output)
            ],
            out_specs=(bspec((TB, L, Ep)), bspec((TB, L, Ep))),
        ),
        compiler_params=pltpu.CompilerParams(
            dimension_semantics=("parallel",),
            # 32 MiB scoped VMEM: default on v6e/v7x, raises v5e's 16 MiB default.
            # _pick_tb's budget (16 MiB) leaves headroom; re-derive both before
            # scaling L/E/H to production sizes, especially on v7x (64 MiB phys).
            vmem_limit_bytes=32 * 1024 * 1024),
    )(s1p, s2p, w1p, b1p, w2p, b2p, m1r, m1c, m2r, m2c)

    return alphas_p[:B, :, :E], betas_p[:B, :, :E]


def init_params(key, embed_size, hidden_size):
    """Deterministic init mimicking nn.Linear (uniform +-1/sqrt(fan_in)).

    Weights are stored as (in_features, out_features), i.e. torch W.T.
    """
    k1, k2, k3, k4 = jax.random.split(key, 4)
    lim1 = 1.0 / jnp.sqrt(jnp.float32(embed_size))
    lim2 = 1.0 / jnp.sqrt(jnp.float32(hidden_size))
    w1 = jax.random.uniform(k1, (embed_size, hidden_size), jnp.float32, -lim1, lim1)
    b1 = jax.random.uniform(k2, (1, hidden_size), jnp.float32, -lim1, lim1)
    w2 = jax.random.uniform(k3, (hidden_size, hidden_size), jnp.float32, -lim2, lim2)
    b2 = jax.random.uniform(k4, (1, hidden_size), jnp.float32, -lim2, lim2)
    return (w1, b1, w2, b2)


def _reference(s1, s2, mask1, mask2, params):
    """Pure-JAX mirror of AttendFeedForward.forward (eval mode)."""
    w1, b1, w2, b2 = params

    def mlp(x):
        h = jnp.maximum(x @ w1 + b1, 0.0)
        return jnp.maximum(h @ w2 + b2, 0.0)

    h1 = mlp(s1)
    h2 = mlp(s2)
    e = jnp.einsum('bik,bjk->bij', h1, h2)            # (B, LA, LB)

    # NOTE: the reference multiplies logits by the 0/1 mask (masked positions
    # still get exp(0)/Z weight) — faithfully mirrored from the PyTorch module.
    ea = e * mask1[:, :, None]
    ea = jnp.exp(ea - jnp.max(ea, axis=1, keepdims=True))
    ea = ea / jnp.sum(ea, axis=1, keepdims=True)

    eb = e * mask2[:, None, :]
    eb = jnp.exp(eb - jnp.max(eb, axis=2, keepdims=True))
    eb = eb / jnp.sum(eb, axis=2, keepdims=True)

    alphas = jnp.einsum('bij,bie->bje', ea, s1) * mask2[:, :, None]
    betas = jnp.einsum('bij,bje->bie', eb, s2) * mask1[:, :, None]
    return alphas, betas


if __name__ == "__main__":
    B, L, E, H = 2, 8, 32, 32
    key = jax.random.PRNGKey(0)
    ks = jax.random.split(key, 5)

    s1 = jax.random.normal(ks[0], (B, L, E), jnp.float32)
    s2 = jax.random.normal(ks[1], (B, L, E), jnp.float32)
    mask1 = (jax.random.uniform(ks[2], (B, L)) > 0.3).astype(jnp.float32)
    mask2 = (jax.random.uniform(ks[3], (B, L)) > 0.3).astype(jnp.float32)
    params = init_params(ks[4], E, H)

    fwd = jax.jit(attend_feedforward)
    alphas, betas = fwd(s1, s2, mask1, mask2, params)
    jax.block_until_ready((alphas, betas))

    ra, rb = _reference(s1, s2, mask1, mask2, params)
    assert alphas.shape == (B, L, E) and betas.shape == (B, L, E)
    # Tolerance loosened vs. 1e-4: softmax denominators use the EUP approximate
    # reciprocal (pl.reciprocal(..., approx=True)); everything else is f32-exact.
    assert jnp.allclose(alphas, ra, atol=2e-3, rtol=2e-3), \
        float(jnp.max(jnp.abs(alphas - ra)))
    assert jnp.allclose(betas, rb, atol=2e-3, rtol=2e-3), \
        float(jnp.max(jnp.abs(betas - rb)))

    print("KERNEL_OK")
</pallas_src>

<mosaic_0001>
module attributes {stable_mosaic.version = 11 : i64} {
  func.func @_attend_ff_kernel(%arg0: i32, %arg1: memref<1x8x128xf32, #tpu.memory_space<vmem>>, %arg2: memref<1x8x128xf32, #tpu.memory_space<vmem>>, %arg3: memref<128x128xf32, #tpu.memory_space<vmem>>, %arg4: memref<1x128xf32, #tpu.memory_space<vmem>>, %arg5: memref<128x128xf32, #tpu.memory_space<vmem>>, %arg6: memref<1x128xf32, #tpu.memory_space<vmem>>, %arg7: memref<1x1x8xf32, #tpu.memory_space<vmem>>, %arg8: memref<1x8x1xf32, #tpu.memory_space<vmem>>, %arg9: memref<1x1x8xf32, #tpu.memory_space<vmem>>, %arg10: memref<1x8x1xf32, #tpu.memory_space<vmem>>, %arg11: memref<1x8x128xf32, #tpu.memory_space<vmem>>, %arg12: memref<1x8x128xf32, #tpu.memory_space<vmem>>) attributes {dimension_semantics = [#tpu.dimension_semantics<parallel>], iteration_bounds = array<i64: 2>, scalar_prefetch = 0 : i64, scratch_operands = 0 : i64, tpu.core_type = #tpu.core_type<tc>, window_params = [{transform_indices = @transform_0, window_bounds = array<i64: 1, 8, 128>}, {transform_indices = @transform_1, window_bounds = array<i64: 1, 8, 128>}, {pipeline_mode = #tpu.pipeline_mode<synchronous>, transform_indices = @transform_2, window_bounds = array<i64: 128, 128>}, {pipeline_mode = #tpu.pipeline_mode<synchronous>, transform_indices = @transform_3, window_bounds = array<i64: 1, 128>}, {pipeline_mode = #tpu.pipeline_mode<synchronous>, transform_indices = @transform_4, window_bounds = array<i64: 128, 128>}, {pipeline_mode = #tpu.pipeline_mode<synchronous>, transform_indices = @transform_5, window_bounds = array<i64: 1, 128>}, {transform_indices = @transform_6, window_bounds = array<i64: 1, 1, 8>}, {transform_indices = @transform_7, window_bounds = array<i64: 1, 8, 1>}, {transform_indices = @transform_8, window_bounds = array<i64: 1, 1, 8>}, {transform_indices = @transform_9, window_bounds = array<i64: 1, 8, 1>}, {transform_indices = @transform_10, window_bounds = array<i64: 1, 8, 128>}, {transform_indices = @transform_11, window_bounds = array<i64: 1, 8, 128>}]} {
    %c0 = arith.constant 0 : index
    %c0_0 = arith.constant 0 : index
    %0 = vector.load %arg3[%c0, %c0_0] : memref<128x128xf32, #tpu.memory_space<vmem>>, vector<128x128xf32>
    %c0_1 = arith.constant 0 : index
    %c0_2 = arith.constant 0 : index
    %1 = vector.load %arg4[%c0_1, %c0_2] : memref<1x128xf32, #tpu.memory_space<vmem>>, vector<1x128xf32>
    %c0_3 = arith.constant 0 : index
    %c0_4 = arith.constant 0 : index
    %2 = vector.load %arg5[%c0_3, %c0_4] : memref<128x128xf32, #tpu.memory_space<vmem>>, vector<128x128xf32>
    %c0_5 = arith.constant 0 : index
    %c0_6 = arith.constant 0 : index
    %3 = vector.load %arg6[%c0_5, %c0_6] : memref<1x128xf32, #tpu.memory_space<vmem>>, vector<1x128xf32>
    %c0_7 = arith.constant 0 : index
    %c0_8 = arith.constant 0 : index
    %c0_9 = arith.constant 0 : index
    %4 = vector.load %arg1[%c0_7, %c0_8, %c0_9] : memref<1x8x128xf32, #tpu.memory_space<vmem>>, vector<1x8x128xf32>
    %c0_10 = arith.constant 0 : index
    %c0_11 = arith.constant 0 : index
    %c0_12 = arith.constant 0 : index
    %5 = vector.load %arg2[%c0_10, %c0_11, %c0_12] : memref<1x8x128xf32, #tpu.memory_space<vmem>>, vector<1x8x128xf32>
    %6 = vector.shape_cast %4 : vector<1x8x128xf32> to vector<8x128xf32>
    %cst = arith.constant dense<0.000000e+00> : vector<8x128xf32>
    %7 = tpu.matmul %6, %0, %cst {dimension_numbers = #tpu.dot_dimension_numbers<[1], [0], [0], [1], [0, 0, 1, 1], [], []>} : vector<8x128xf32>, vector<128x128xf32>, vector<8x128xf32> -> vector<8x128xf32>
    %8 = vector.broadcast %1 : vector<1x128xf32> to vector<8x128xf32>
    %9 = arith.addf %7, %8 : vector<8x128xf32>
    %cst_13 = arith.constant 0.000000e+00 : f32
    %10 = vector.broadcast %cst_13 : f32 to vector<8x128xf32>
    %11 = arith.maximumf %9, %10 : vector<8x128xf32>
    %cst_14 = arith.constant dense<0.000000e+00> : vector<8x128xf32>
    %12 = tpu.matmul %11, %2, %cst_14 {dimension_numbers = #tpu.dot_dimension_numbers<[1], [0], [0], [1], [0, 0, 1, 1], [], []>} : vector<8x128xf32>, vector<128x128xf32>, vector<8x128xf32> -> vector<8x128xf32>
    %13 = vector.broadcast %3 : vector<1x128xf32> to vector<8x128xf32>
    %14 = arith.addf %12, %13 : vector<8x128xf32>
    %cst_15 = arith.constant 0.000000e+00 : f32
    %15 = vector.broadcast %cst_15 : f32 to vector<8x128xf32>
    %16 = arith.maximumf %14, %15 : vector<8x128xf32>
    %17 = vector.shape_cast %16 : vector<8x128xf32> to vector<1x8x128xf32>
    %18 = vector.shape_cast %5 : vector<1x8x128xf32> to vector<8x128xf32>
    %cst_16 = arith.constant dense<0.000000e+00> : vector<8x128xf32>
    %19 = tpu.matmul %18, %0, %cst_16 {dimension_numbers = #tpu.dot_dimension_numbers<[1], [0], [0], [1], [0, 0, 1, 1], [], []>} : vector<8x128xf32>, vector<128x128xf32>, vector<8x128xf32> -> vector<8x128xf32>
    %20 = vector.broadcast %1 : vector<1x128xf32> to vector<8x128xf32>
    %21 = arith.addf %19, %20 : vector<8x128xf32>
    %cst_17 = arith.constant 0.000000e+00 : f32
    %22 = vector.broadcast %cst_17 : f32 to vector<8x128xf32>
    %23 = arith.maximumf %21, %22 : vector<8x128xf32>
    %cst_18 = arith.constant dense<0.000000e+00> : vector<8x128xf32>
    %24 = tpu.matmul %23, %2, %cst_18 {dimension_numbers = #tpu.dot_dimension_numbers<[1], [0], [0], [1], [0, 0, 1, 1], [], []>} : vector<8x128xf32>, vector<128x128xf32>, vector<8x128xf32> -> vector<8x128xf32>
    %25 = vector.broadcast %3 : vector<1x128xf32> to vector<8x128xf32>
    %26 = arith.addf %24, %25 : vector<8x128xf32>
    %cst_19 = arith.constant 0.000000e+00 : f32
    %27 = vector.broadcast %cst_19 : f32 to vector<8x128xf32>
    %28 = arith.maximumf %26, %27 : vector<8x128xf32>
    %29 = vector.shape_cast %28 : vector<8x128xf32> to vector<1x8x128xf32>
    "tpu.trace_start"() <{level = 10 : i32, message = "bik,bjk->bij"}> : () -> ()
    %cst_20 = arith.constant dense<0.000000e+00> : vector<1x8x8xf32>
    %30 = tpu.matmul %17, %29, %cst_20 {dimension_numbers = #tpu.dot_dimension_numbers<[2], [2], [1], [1], [0, 0, 0, 1, 1, 1], [0], [0]>} : vector<1x8x128xf32>, vector<1x8x128xf32>, vector<1x8x8xf32> -> vector<1x8x8xf32>
    "tpu.trace_stop"() : () -> ()
    %31 = tpu.transpose %30, [0, 2, 1] : vector<1x8x8xf32> -> vector<1x8x8xf32>
    %c0_21 = arith.constant 0 : index
    %c0_22 = arith.constant 0 : index
    %c0_23 = arith.constant 0 : index
    %32 = vector.load %arg7[%c0_21, %c0_22, %c0_23] : memref<1x1x8xf32, #tpu.memory_space<vmem>>, vector<1x1x8xf32>
    %33 = vector.broadcast %32 : vector<1x1x8xf32> to vector<1x8x8xf32>
    %34 = arith.mulf %31, %33 : vector<1x8x8xf32>
    %cst_24 = arith.constant dense<0xFF800000> : vector<1x8xf32>
    %35 = vector.multi_reduction <maximumf>, %34, %cst_24 [2] : vector<1x8x8xf32> to vector<1x8xf32>
    %36 = vector.shape_cast %35 : vector<1x8xf32> to vector<1x8x1xf32>
    %37 = vector.broadcast %36 : vector<1x8x1xf32> to vector<1x8x8xf32>
    %38 = arith.subf %34, %37 : vector<1x8x8xf32>
    %39 = math.exp %38 : vector<1x8x8xf32>
    %cst_25 = arith.constant dense<0.000000e+00> : vector<1x8xf32>
    %40 = vector.multi_reduction <add>, %39, %cst_25 [2] : vector<1x8x8xf32> to vector<1x8xf32>
    %41 = vector.shape_cast %40 : vector<1x8xf32> to vector<1x8x1xf32>
    %42 = tpu.reciprocal %41 {approx = true} : vector<1x8x1xf32> -> vector<1x8x1xf32>
    %43 = vector.broadcast %42 : vector<1x8x1xf32> to vector<1x8x8xf32>
    %44 = arith.mulf %39, %43 : vector<1x8x8xf32>
    %c0_26 = arith.constant 0 : index
    %c0_27 = arith.constant 0 : index
    %c0_28 = arith.constant 0 : index
    %45 = vector.load %arg9[%c0_26, %c0_27, %c0_28] : memref<1x1x8xf32, #tpu.memory_space<vmem>>, vector<1x1x8xf32>
    %46 = vector.broadcast %45 : vector<1x1x8xf32> to vector<1x8x8xf32>
    %47 = arith.mulf %30, %46 : vector<1x8x8xf32>
    %cst_29 = arith.constant dense<0xFF800000> : vector<1x8xf32>
    %48 = vector.multi_reduction <maximumf>, %47, %cst_29 [2] : vector<1x8x8xf32> to vector<1x8xf32>
    %49 = vector.shape_cast %48 : vector<1x8xf32> to vector<1x8x1xf32>
    %50 = vector.broadcast %49 : vector<1x8x1xf32> to vector<1x8x8xf32>
    %51 = arith.subf %47, %50 : vector<1x8x8xf32>
    %52 = math.exp %51 : vector<1x8x8xf32>
    %cst_30 = arith.constant dense<0.000000e+00> : vector<1x8xf32>
    %53 = vector.multi_reduction <add>, %52, %cst_30 [2] : vector<1x8x8xf32> to vector<1x8xf32>
    %54 = vector.shape_cast %53 : vector<1x8xf32> to vector<1x8x1xf32>
    %55 = tpu.reciprocal %54 {approx = true} : vector<1x8x1xf32> -> vector<1x8x1xf32>
    %56 = vector.broadcast %55 : vector<1x8x1xf32> to vector<1x8x8xf32>
    %57 = arith.mulf %52, %56 : vector<1x8x8xf32>
    "tpu.trace_start"() <{level = 10 : i32, message = "bji,bie->bje"}> : () -> ()
    %cst_31 = arith.constant dense<0.000000e+00> : vector<1x8x128xf32>
    %58 = tpu.matmul %44, %4, %cst_31 {dimension_numbers = #tpu.dot_dimension_numbers<[2], [1], [1], [2], [0, 0, 0, 1, 1, 2], [0], [0]>} : vector<1x8x8xf32>, vector<1x8x128xf32>, vector<1x8x128xf32> -> vector<1x8x128xf32>
    "tpu.trace_stop"() : () -> ()
    %c0_32 = arith.constant 0 : index
    %c0_33 = arith.constant 0 : index
    %c0_34 = arith.constant 0 : index
    %59 = vector.load %arg10[%c0_32, %c0_33, %c0_34] : memref<1x8x1xf32, #tpu.memory_space<vmem>>, vector<1x8x1xf32>
    %60 = vector.broadcast %59 : vector<1x8x1xf32> to vector<1x8x128xf32>
    %61 = arith.mulf %58, %60 : vector<1x8x128xf32>
    %c0_35 = arith.constant 0 : index
    %c0_36 = arith.constant 0 : index
    %c0_37 = arith.constant 0 : index
    %62 = vector.load %arg11[%c0_35, %c0_36, %c0_37] : memref<1x8x128xf32, #tpu.memory_space<vmem>>, vector<1x8x128xf32>
    tpu.vector_store %arg11[%c0_35, %c0_36, %c0_37], %61 {strides = array<i32>} : memref<1x8x128xf32, #tpu.memory_space<vmem>>, vector<1x8x128xf32>,
    "tpu.trace_start"() <{level = 10 : i32, message = "bij,bje->bie"}> : () -> ()
    %cst_38 = arith.constant dense<0.000000e+00> : vector<1x8x128xf32>
    %63 = tpu.matmul %57, %5, %cst_38 {dimension_numbers = #tpu.dot_dimension_numbers<[2], [1], [1], [2], [0, 0, 0, 1, 1, 2], [0], [0]>} : vector<1x8x8xf32>, vector<1x8x128xf32>, vector<1x8x128xf32> -> vector<1x8x128xf32>
    "tpu.trace_stop"() : () -> ()
    %c0_39 = arith.constant 0 : index
    %c0_40 = arith.constant 0 : index
    %c0_41 = arith.constant 0 : index
    %64 = vector.load %arg8[%c0_39, %c0_40, %c0_41] : memref<1x8x1xf32, #tpu.memory_space<vmem>>, vector<1x8x1xf32>
    %65 = vector.broadcast %64 : vector<1x8x1xf32> to vector<1x8x128xf32>
    %66 = arith.mulf %63, %65 : vector<1x8x128xf32>
    %c0_42 = arith.constant 0 : index
    %c0_43 = arith.constant 0 : index
    %c0_44 = arith.constant 0 : index
    %67 = vector.load %arg12[%c0_42, %c0_43, %c0_44] : memref<1x8x128xf32, #tpu.memory_space<vmem>>, vector<1x8x128xf32>
    tpu.vector_store %arg12[%c0_42, %c0_43, %c0_44], %66 {strides = array<i32>} : memref<1x8x128xf32, #tpu.memory_space<vmem>>, vector<1x8x128xf32>,
    return
  }
  func.func @transform_0(%arg0: i32) -> (i32, i32, i32) {
    %c0_i32 = arith.constant 0 : i32
    %c0_i32_0 = arith.constant 0 : i32
    %c0_i32_1 = arith.constant 0 : i32
    return %arg0, %c0_i32, %c0_i32_0 : i32, i32, i32
  }
  func.func @transform_1(%arg0: i32) -> (i32, i32, i32) {
    %c0_i32 = arith.constant 0 : i32
    %c0_i32_0 = arith.constant 0 : i32
    %c0_i32_1 = arith.constant 0 : i32
    return %arg0, %c0_i32, %c0_i32_0 : i32, i32, i32
  }
  func.func @transform_2(%arg0: i32) -> (i32, i32) {
    %c0_i32 = arith.constant 0 : i32
    %c0_i32_0 = arith.constant 0 : i32
    %c0_i32_1 = arith.constant 0 : i32
    return %c0_i32, %c0_i32_0 : i32, i32
  }
  func.func @transform_3(%arg0: i32) -> (i32, i32) {
    %c0_i32 = arith.constant 0 : i32
    %c0_i32_0 = arith.constant 0 : i32
    %c0_i32_1 = arith.constant 0 : i32
    return %c0_i32, %c0_i32_0 : i32, i32
  }
  func.func @transform_4(%arg0: i32) -> (i32, i32) {
    %c0_i32 = arith.constant 0 : i32
    %c0_i32_0 = arith.constant 0 : i32
    %c0_i32_1 = arith.constant 0 : i32
    return %c0_i32, %c0_i32_0 : i32, i32
  }
  func.func @transform_5(%arg0: i32) -> (i32, i32) {
    %c0_i32 = arith.constant 0 : i32
    %c0_i32_0 = arith.constant 0 : i32
    %c0_i32_1 = arith.constant 0 : i32
    return %c0_i32, %c0_i32_0 : i32, i32
  }
  func.func @transform_6(%arg0: i32) -> (i32, i32, i32) {
    %c0_i32 = arith.constant 0 : i32
    %c0_i32_0 = arith.constant 0 : i32
    %c0_i32_1 = arith.constant 0 : i32
    return %arg0, %c0_i32, %c0_i32_0 : i32, i32, i32
  }
  func.func @transform_7(%arg0: i32) -> (i32, i32, i32) {
    %c0_i32 = arith.constant 0 : i32
    %c0_i32_0 = arith.constant 0 : i32
    %c0_i32_1 = arith.constant 0 : i32
    return %arg0, %c0_i32, %c0_i32_0 : i32, i32, i32
  }
  func.func @transform_8(%arg0: i32) -> (i32, i32, i32) {
    %c0_i32 = arith.constant 0 : i32
    %c0_i32_0 = arith.constant 0 : i32
    %c0_i32_1 = arith.constant 0 : i32
    return %arg0, %c0_i32, %c0_i32_0 : i32, i32, i32
  }
  func.func @transform_9(%arg0: i32) -> (i32, i32, i32) {
    %c0_i32 = arith.constant 0 : i32
    %c0_i32_0 = arith.constant 0 : i32
    %c0_i32_1 = arith.constant 0 : i32
    return %arg0, %c0_i32, %c0_i32_0 : i32, i32, i32
  }
  func.func @transform_10(%arg0: i32) -> (i32, i32, i32) {
    %c0_i32 = arith.constant 0 : i32
    %c0_i32_0 = arith.constant 0 : i32
    %c0_i32_1 = arith.constant 0 : i32
    return %arg0, %c0_i32, %c0_i32_0 : i32, i32, i32
  }
  func.func @transform_11(%arg0: i32) -> (i32, i32, i32) {
    %c0_i32 = arith.constant 0 : i32
    %c0_i32_0 = arith.constant 0 : i32
    %c0_i32_1 = arith.constant 0 : i32
    return %arg0, %c0_i32, %c0_i32_0 : i32, i32, i32
  }
}

</mosaic_0001>

<llo_original>
// kernel: attend_feedforward.1
$region0: #{attend_feedforward.1}
  #allocation0 [shape = 'u32[]', space=smem, size = 0x4, offset = 0x4, fixed_abs, tag = 'smem constant byte address 0x4 - core index']
  #allocation1 [shape = 'u32[144,128]{1,0:T(1,128)}', space=vmem, size = 0x12000, scoped, tag = 'internal scratch']
  %s0 = inlined_call_operand.vmem [shape: f32[2,8,128], index: 0, kind: input, shape index: {}]
  %s1 = inlined_call_operand.vmem [shape: f32[2,8,128], index: 1, kind: input, shape index: {}]
  %s2 = inlined_call_operand.vmem [shape: f32[128,128], index: 2, kind: input, shape index: {}]
  %s3 = inlined_call_operand.vmem [shape: f32[1,128], index: 3, kind: input, shape index: {}]
  %s4 = inlined_call_operand.vmem [shape: f32[128,128], index: 4, kind: input, shape index: {}]
  %s5 = inlined_call_operand.vmem [shape: f32[1,128], index: 5, kind: input, shape index: {}]
  %s6 = inlined_call_operand.vmem [shape: f32[2,1,8], index: 6, kind: input, shape index: {}]
  %s7 = inlined_call_operand.vmem [shape: f32[2,8,1], index: 7, kind: input, shape index: {}]
  %s8 = inlined_call_operand.vmem [shape: f32[2,1,8], index: 8, kind: input, shape index: {}]
  %s9 = inlined_call_operand.vmem [shape: f32[2,8,1], index: 9, kind: input, shape index: {}]
  %s10 = inlined_call_operand.hbm [shape: f32[2,8,128], index: 10, kind: output, shape index: {0}]
  %s11 = inlined_call_operand.hbm [shape: f32[2,8,128], index: 11, kind: output, shape index: {1}]
  %12 = xla_tuple %s10, %s11
  %s13 = sld [smem:[#allocation0]]
  $region81: #{attend_feedforward.1} parent=0
    _
  %s15 = ssub.s32 1, %s13
  %s16 = scalar_select 0, %s15, %s13
  $region1: #{attend_feedforward.1} parent=0
    #allocation2 [shape = 'u8[8192]{0}', space=vmem, size = 0x2000, scoped, tag = 'output window, operand 0']
    #allocation3 [shape = 's32[2]{0}', space=sflag, size = 0x8, scoped, tag = 'scoped memory for attend_feedforward.1']
    #allocation4 [shape = 'u8[8192]{0}', space=vmem, size = 0x2000, scoped, tag = 'output window, operand 1']
    #allocation5 [shape = 's32[2]{0}', space=sflag, size = 0x8, scoped, tag = 'scoped memory for attend_feedforward.1']
    %17 = vsyncpa [#allocation3], 0
    %s18 = scalar_lea.sflag [#allocation3], 1
    %19 = vsyncpa %s18, 0
    %20 = vsyncpa [#allocation5], 0
    %s21 = scalar_lea.sflag [#allocation5], 1
    %22 = vsyncpa %s21, 0
    loop: start=0, step=1, limit=4
    $region2: #{attend_feedforward.1} parent=1 // loop_pre_header
      _
    $region3: #{attend_feedforward.1} parent=1 // loop_header
      %s24 = sphi 0, %s28
      %p25 = scmp.ge.s32.totalorder %s24, 4
      %s34 = sphi 0, %s36
      %s37 = sphi 0, %s34
      %s38 = sphi 0, %s37
      %s54 = sphi 0, %s38
      %s60 = sphi 0, %s62
      %s63 = sphi 0, %s60
      %s64 = sphi 0, %s63
      %s80 = sphi 0, %s64
      %s84 = sphi 0, %s84
      %s86 = sphi 0, %s84
      %s87 = sphi 0, %s86
      %s101 = sphi 0, %s87
      %s105 = sphi 0, %s105
      %s107 = sphi 0, %s105
      %s108 = sphi 0, %s107
      %s122 = sphi 0, %s108
      %s126 = sphi 0, %s126
      %s128 = sphi 0, %s126
      %s129 = sphi 0, %s128
      %s143 = sphi 0, %s129
      %s147 = sphi 0, %s147
      %s149 = sphi 0, %s147
      %s150 = sphi 0, %s149
      %s164 = sphi 0, %s150
      %s170 = sphi 0, %s172
      %s173 = sphi 0, %s170
      %s174 = sphi 0, %s173
      %s190 = sphi 0, %s174
      %s196 = sphi 0, %s198
      %s199 = sphi 0, %s196
      %s200 = sphi 0, %s199
      %s216 = sphi 0, %s200
      %s222 = sphi 0, %s224
      %s225 = sphi 0, %s222
      %s226 = sphi 0, %s225
      %s242 = sphi 0, %s226
      %s248 = sphi 0, %s250
      %s251 = sphi 0, %s248
      %s252 = sphi 0, %s251
      %s268 = sphi 0, %s252
      %s274 = sphi 0, %s276
      %s277 = sphi 0, %s274
      %s278 = sphi 0, %s277
      %s294 = sphi 0, %s278
      %s300 = sphi 0, %s302
      %s303 = sphi 0, %s300
      %s304 = sphi 0, %s303
      %s320 = sphi 0, %s304
    $region4: #{attend_feedforward.1} parent=1 // loop_header_branch
      %27 = sbr.rel (%p25) target = $region8
    $region5: #{attend_feedforward.1} parent=1 // loop_body
      %s29 = ssub.s32 %s24, 1
      %s30 = ssub.s32 %s24, 2
      %s31 = sadd.s32 %s24, 1
      %s32 = ssub.s32 %s24, %s31
      %p33 = scmp.eq.s32.totalorder %s32, 0
      %s35 = sadd.s32 %s34, 1
      %s36 = scalar_select %p33, %s34, %s35
      %p39 = pneg %p33
      %p40 = scmp.eq.s32.totalorder %s24, 1
      %p41 = por %p39, %p40
      %p42 = scmp.ne.s32.totalorder %s34, %s37
      %p43 = scmp.eq.s32.totalorder %s24, 0
      %p44 = por %p42, %p43
      %p45 = scmp.ne.s32.totalorder %s34, %s37
      %p46 = scmp.eq.s32.totalorder %s29, 1
      %p47 = por %p45, %p46
      %p48 = scmp.ne.s32.totalorder %s37, %s38
      %p49 = scmp.eq.s32.totalorder %s29, 0
      %p50 = por %p48, %p49
      %p51 = scmp.ne.s32.totalorder %s37, %s38
      %p52 = scmp.eq.s32.totalorder %s30, 1
      %p53 = por %p51, %p52
      %p55 = scmp.ne.s32.totalorder %s38, %s54
      %p56 = scmp.eq.s32.totalorder %s30, 0
      %p57 = por %p55, %p56
      %s58 = ssub.s32 %s24, %s31
      %p59 = scmp.eq.s32.totalorder %s58, 0
      %s61 = sadd.s32 %s60, 1
      %s62 = scalar_select %p59, %s60, %s61
      %p65 = pneg %p59
      %p66 = scmp.eq.s32.totalorder %s24, 1
      %p67 = por %p65, %p66
      %p68 = scmp.ne.s32.totalorder %s60, %s63
      %p69 = scmp.eq.s32.totalorder %s24, 0
      %p70 = por %p68, %p69
      %p71 = scmp.ne.s32.totalorder %s60, %s63
      %p72 = scmp.eq.s32.totalorder %s29, 1
      %p73 = por %p71, %p72
      %p74 = scmp.ne.s32.totalorder %s63, %s64
      %p75 = scmp.eq.s32.totalorder %s29, 0
      %p76 = por %p74, %p75
      %p77 = scmp.ne.s32.totalorder %s63, %s64
      %p78 = scmp.eq.s32.totalorder %s30, 1
      %p79 = por %p77, %p78
      %p81 = scmp.ne.s32.totalorder %s64, %s80
      %p82 = scmp.eq.s32.totalorder %s30, 0
      %p83 = por %p81, %p82
      %s85 = sadd.s32 %s84, 1
      %p88 = scmp.eq.s32.totalorder %s24, 1
      %p89 = scmp.ne.s32.totalorder %s84, %s86
      %p90 = scmp.eq.s32.totalorder %s24, 0
      %p91 = por %p89, %p90
      %p92 = scmp.ne.s32.totalorder %s84, %s86
      %p93 = scmp.eq.s32.totalorder %s29, 1
      %p94 = por %p92, %p93
      %p95 = scmp.ne.s32.totalorder %s86, %s87
      %p96 = scmp.eq.s32.totalorder %s29, 0
      %p97 = por %p95, %p96
      %p98 = scmp.ne.s32.totalorder %s86, %s87
      %p99 = scmp.eq.s32.totalorder %s30, 1
      %p100 = por %p98, %p99
      %p102 = scmp.ne.s32.totalorder %s87, %s101
      %p103 = scmp.eq.s32.totalorder %s30, 0
      %p104 = por %p102, %p103
      %s106 = sadd.s32 %s105, 1
      %p109 = scmp.eq.s32.totalorder %s24, 1
      %p110 = scmp.ne.s32.totalorder %s105, %s107
      %p111 = scmp.eq.s32.totalorder %s24, 0
      %p112 = por %p110, %p111
      %p113 = scmp.ne.s32.totalorder %s105, %s107
      %p114 = scmp.eq.s32.totalorder %s29, 1
      %p115 = por %p113, %p114
      %p116 = scmp.ne.s32.totalorder %s107, %s108
      %p117 = scmp.eq.s32.totalorder %s29, 0
      %p118 = por %p116, %p117
      %p119 = scmp.ne.s32.totalorder %s107, %s108
      %p120 = scmp.eq.s32.totalorder %s30, 1
      %p121 = por %p119, %p120
      %p123 = scmp.ne.s32.totalorder %s108, %s122
      %p124 = scmp.eq.s32.totalorder %s30, 0
      %p125 = por %p123, %p124
      %s127 = sadd.s32 %s126, 1
      %p130 = scmp.eq.s32.totalorder %s24, 1
      %p131 = scmp.ne.s32.totalorder %s126, %s128
      %p132 = scmp.eq.s32.totalorder %s24, 0
      %p133 = por %p131, %p132
      %p134 = scmp.ne.s32.totalorder %s126, %s128
      %p135 = scmp.eq.s32.totalorder %s29, 1
      %p136 = por %p134, %p135
      %p137 = scmp.ne.s32.totalorder %s128, %s129
      %p138 = scmp.eq.s32.totalorder %s29, 0
      %p139 = por %p137, %p138
      %p140 = scmp.ne.s32.totalorder %s128, %s129
      %p141 = scmp.eq.s32.totalorder %s30, 1
      %p142 = por %p140, %p141
      %p144 = scmp.ne.s32.totalorder %s129, %s143
      %p145 = scmp.eq.s32.totalorder %s30, 0
      %p146 = por %p144, %p145
      %s148 = sadd.s32 %s147, 1
      %p151 = scmp.eq.s32.totalorder %s24, 1
      %p152 = scmp.ne.s32.totalorder %s147, %s149
      %p153 = scmp.eq.s32.totalorder %s24, 0
      %p154 = por %p152, %p153
      %p155 = scmp.ne.s32.totalorder %s147, %s149
      %p156 = scmp.eq.s32.totalorder %s29, 1
      %p157 = por %p155, %p156
      %p158 = scmp.ne.s32.totalorder %s149, %s150
      %p159 = scmp.eq.s32.totalorder %s29, 0
      %p160 = por %p158, %p159
      %p161 = scmp.ne.s32.totalorder %s149, %s150
      %p162 = scmp.eq.s32.totalorder %s30, 1
      %p163 = por %p161, %p162
      %p165 = scmp.ne.s32.totalorder %s150, %s164
      %p166 = scmp.eq.s32.totalorder %s30, 0
      %p167 = por %p165, %p166
      %s168 = ssub.s32 %s24, %s31
      %p169 = scmp.eq.s32.totalorder %s168, 0
      %s171 = sadd.s32 %s170, 1
      %s172 = scalar_select %p169, %s170, %s171
      %p175 = pneg %p169
      %p176 = scmp.eq.s32.totalorder %s24, 1
      %p177 = por %p175, %p176
      %p178 = scmp.ne.s32.totalorder %s170, %s173
      %p179 = scmp.eq.s32.totalorder %s24, 0
      %p180 = por %p178, %p179
      %p181 = scmp.ne.s32.totalorder %s170, %s173
      %p182 = scmp.eq.s32.totalorder %s29, 1
      %p183 = por %p181, %p182
      %p184 = scmp.ne.s32.totalorder %s173, %s174
      %p185 = scmp.eq.s32.totalorder %s29, 0
      %p186 = por %p184, %p185
      %p187 = scmp.ne.s32.totalorder %s173, %s174
      %p188 = scmp.eq.s32.totalorder %s30, 1
      %p189 = por %p187, %p188
      %p191 = scmp.ne.s32.totalorder %s174, %s190
      %p192 = scmp.eq.s32.totalorder %s30, 0
      %p193 = por %p191, %p192
      %s194 = ssub.s32 %s24, %s31
      %p195 = scmp.eq.s32.totalorder %s194, 0
      %s197 = sadd.s32 %s196, 1
      %s198 = scalar_select %p195, %s196, %s197
      %p201 = pneg %p195
      %p202 = scmp.eq.s32.totalorder %s24, 1
      %p203 = por %p201, %p202
      %p204 = scmp.ne.s32.totalorder %s196, %s199
      %p205 = scmp.eq.s32.totalorder %s24, 0
      %p206 = por %p204, %p205
      %p207 = scmp.ne.s32.totalorder %s196, %s199
      %p208 = scmp.eq.s32.totalorder %s29, 1
      %p209 = por %p207, %p208
      %p210 = scmp.ne.s32.totalorder %s199, %s200
      %p211 = scmp.eq.s32.totalorder %s29, 0
      %p212 = por %p210, %p211
      %p213 = scmp.ne.s32.totalorder %s199, %s200
      %p214 = scmp.eq.s32.totalorder %s30, 1
      %p215 = por %p213, %p214
      %p217 = scmp.ne.s32.totalorder %s200, %s216
      %p218 = scmp.eq.s32.totalorder %s30, 0
      %p219 = por %p217, %p218
      %s220 = ssub.s32 %s24, %s31
      %p221 = scmp.eq.s32.totalorder %s220, 0
      %s223 = sadd.s32 %s222, 1
      %s224 = scalar_select %p221, %s222, %s223
      %p227 = pneg %p221
      %p228 = scmp.eq.s32.totalorder %s24, 1
      %p229 = por %p227, %p228
      %p230 = scmp.ne.s32.totalorder %s222, %s225
      %p231 = scmp.eq.s32.totalorder %s24, 0
      %p232 = por %p230, %p231
      %p233 = scmp.ne.s32.totalorder %s222, %s225
      %p234 = scmp.eq.s32.totalorder %s29, 1
      %p235 = por %p233, %p234
      %p236 = scmp.ne.s32.totalorder %s225, %s226
      %p237 = scmp.eq.s32.totalorder %s29, 0
      %p238 = por %p236, %p237
      %p239 = scmp.ne.s32.totalorder %s225, %s226
      %p240 = scmp.eq.s32.totalorder %s30, 1
      %p241 = por %p239, %p240
      %p243 = scmp.ne.s32.totalorder %s226, %s242
      %p244 = scmp.eq.s32.totalorder %s30, 0
      %p245 = por %p243, %p244
      %s246 = ssub.s32 %s24, %s31
      %p247 = scmp.eq.s32.totalorder %s246, 0
      %s249 = sadd.s32 %s248, 1
      %s250 = scalar_select %p247, %s248, %s249
      %p253 = pneg %p247
      %p254 = scmp.eq.s32.totalorder %s24, 1
      %p255 = por %p253, %p254
      %p256 = scmp.ne.s32.totalorder %s248, %s251
      %p257 = scmp.eq.s32.totalorder %s24, 0
      %p258 = por %p256, %p257
      %p259 = scmp.ne.s32.totalorder %s248, %s251
      %p260 = scmp.eq.s32.totalorder %s29, 1
      %p261 = por %p259, %p260
      %p262 = scmp.ne.s32.totalorder %s251, %s252
      %p263 = scmp.eq.s32.totalorder %s29, 0
      %p264 = por %p262, %p263
      %p265 = scmp.ne.s32.totalorder %s251, %s252
      %p266 = scmp.eq.s32.totalorder %s30, 1
      %p267 = por %p265, %p266
      %p269 = scmp.ne.s32.totalorder %s252, %s268
      %p270 = scmp.eq.s32.totalorder %s30, 0
      %p271 = por %p269, %p270
      %s272 = ssub.s32 %s24, %s31
      %p273 = scmp.eq.s32.totalorder %s272, 0
      %s275 = sadd.s32 %s274, 1
      %s276 = scalar_select %p273, %s274, %s275
      %p279 = pneg %p273
      %p280 = scmp.eq.s32.totalorder %s24, 1
      %p281 = por %p279, %p280
      %p282 = scmp.ne.s32.totalorder %s274, %s277
      %p283 = scmp.eq.s32.totalorder %s24, 0
      %p284 = por %p282, %p283
      %p285 = scmp.ne.s32.totalorder %s274, %s277
      %p286 = scmp.eq.s32.totalorder %s29, 1
      %p287 = por %p285, %p286
      %p288 = scmp.ne.s32.totalorder %s277, %s278
      %p289 = scmp.eq.s32.totalorder %s29, 0
      %p290 = por %p288, %p289
      %p291 = scmp.ne.s32.totalorder %s277, %s278
      %p292 = scmp.eq.s32.totalorder %s30, 1
      %p293 = por %p291, %p292
      %p295 = scmp.ne.s32.totalorder %s278, %s294
      %p296 = scmp.eq.s32.totalorder %s30, 0
      %p297 = por %p295, %p296
      %s298 = ssub.s32 %s24, %s31
      %p299 = scmp.eq.s32.totalorder %s298, 0
      %s301 = sadd.s32 %s300, 1
      %s302 = scalar_select %p299, %s300, %s301
      %p305 = pneg %p299
      %p306 = scmp.eq.s32.totalorder %s24, 1
      %p307 = por %p305, %p306
      %p308 = scmp.ne.s32.totalorder %s300, %s303
      %p309 = scmp.eq.s32.totalorder %s24, 0
      %p310 = por %p308, %p309
      %p311 = scmp.ne.s32.totalorder %s300, %s303
      %p312 = scmp.eq.s32.totalorder %s29, 1
      %p313 = por %p311, %p312
      %p314 = scmp.ne.s32.totalorder %s303, %s304
      %p315 = scmp.eq.s32.totalorder %s29, 0
      %p316 = por %p314, %p315
      %p317 = scmp.ne.s32.totalorder %s303, %s304
      %p318 = scmp.eq.s32.totalorder %s30, 1
      %p319 = por %p317, %p318
      %p321 = scmp.ne.s32.totalorder %s304, %s320
      %p322 = scmp.eq.s32.totalorder %s30, 0
      %p323 = por %p321, %p322
      %p324 = scmp.le.s32.totalorder 1, %s24
      %p325 = scmp.lt.s32.totalorder %s24, 3
      %p326 = pnand %p324, %p325
      %p327 = pneg %p326
      // Predicated region
      $region9: #{attend_feedforward.1} parent=5 // pred_check
        _
      $region10: #{attend_feedforward.1} parent=5 // pred_check_branch
        %329 = sbr.rel (%p326) target = $region12
      $region11: #{attend_feedforward.1} parent=5 // pred_region
        %s330 = ssub.s32 %s24, 1
        // Predicated region
        $region13: #{attend_feedforward.1} parent=11 // pred_check
          %p331 = pneg %p97
        $region14: #{attend_feedforward.1} parent=11 // pred_check_branch
          %333 = sbr.rel (%p331) target = $region16
        $region15: #{attend_feedforward.1} parent=11 // pred_region
          _
        $region16: #{attend_feedforward.1} parent=11 // pred_fallthru
          _
        // Predicated region
        $region17: #{attend_feedforward.1} parent=11 // pred_check
          %p334 = pneg %p118
        $region18: #{attend_feedforward.1} parent=11 // pred_check_branch
          %336 = sbr.rel (%p334) target = $region20
        $region19: #{attend_feedforward.1} parent=11 // pred_region
          _
        $region20: #{attend_feedforward.1} parent=11 // pred_fallthru
          _
        // Predicated region
        $region21: #{attend_feedforward.1} parent=11 // pred_check
          %p337 = pneg %p139
        $region22: #{attend_feedforward.1} parent=11 // pred_check_branch
          %339 = sbr.rel (%p337) target = $region24
        $region23: #{attend_feedforward.1} parent=11 // pred_region
          _
        $region24: #{attend_feedforward.1} parent=11 // pred_fallthru
          _
        // Predicated region
        $region25: #{attend_feedforward.1} parent=11 // pred_check
          %p340 = pneg %p160
        $region26: #{attend_feedforward.1} parent=11 // pred_check_branch
          %342 = sbr.rel (%p340) target = $region28
        $region27: #{attend_feedforward.1} parent=11 // pred_region
          _
        $region28: #{attend_feedforward.1} parent=11 // pred_fallthru
          _
      $region12: #{attend_feedforward.1} parent=5 // pred_fallthru
        _
      %p343 = scmp.lt.s32.totalorder %s24, 2
      // Predicated region
      $region29: #{attend_feedforward.1} parent=5 // pred_check
        %p344 = pneg %p343
      $region30: #{attend_feedforward.1} parent=5 // pred_check_branch
        %346 = sbr.rel (%p344) target = $region32
      $region31: #{attend_feedforward.1} parent=5 // pred_region
        // Predicated region
        $region33: #{attend_feedforward.1} parent=31 // pred_check
          %p347 = pneg %p44
        $region34: #{attend_feedforward.1} parent=31 // pred_check_branch
          %349 = sbr.rel (%p347) target = $region36
        $region35: #{attend_feedforward.1} parent=31 // pred_region
          %p350 = scmp.lt.s32.totalorder %s24, 1
          %s351 = scalar_select %p350, %s24, 1
          %s352 = smul.addr %s351, 8
          %s353 = scalar_lea.vmem %s0, %s352
        $region36: #{attend_feedforward.1} parent=31 // pred_fallthru
          _
        // Predicated region
        $region37: #{attend_feedforward.1} parent=31 // pred_check
          %p354 = pneg %p70
        $region38: #{attend_feedforward.1} parent=31 // pred_check_branch
          %356 = sbr.rel (%p354) target = $region40
        $region39: #{attend_feedforward.1} parent=31 // pred_region
          %p357 = scmp.lt.s32.totalorder %s24, 1
          %s358 = scalar_select %p357, %s24, 1
          %s359 = smul.addr %s358, 8
          %s360 = scalar_lea.vmem %s1, %s359
        $region40: #{attend_feedforward.1} parent=31 // pred_fallthru
          _
        // Predicated region
        $region41: #{attend_feedforward.1} parent=31 // pred_check
          %p361 = pneg %p180
        $region42: #{attend_feedforward.1} parent=31 // pred_check_branch
          %363 = sbr.rel (%p361) target = $region44
        $region43: #{attend_feedforward.1} parent=31 // pred_region
          %p364 = scmp.lt.s32.totalorder %s24, 1
          %s365 = scalar_select %p364, %s24, 1
          %s366 = scalar_lea.vmem %s6, %s365
        $region44: #{attend_feedforward.1} parent=31 // pred_fallthru
          _
        // Predicated region
        $region45: #{attend_feedforward.1} parent=31 // pred_check
          %p367 = pneg %p206
        $region46: #{attend_feedforward.1} parent=31 // pred_check_branch
          %369 = sbr.rel (%p367) target = $region48
        $region47: #{attend_feedforward.1} parent=31 // pred_region
          %p370 = scmp.lt.s32.totalorder %s24, 1
          %s371 = scalar_select %p370, %s24, 1
          %s372 = smul.addr %s371, 8
          %s373 = scalar_lea.vmem %s7, %s372
        $region48: #{attend_feedforward.1} parent=31 // pred_fallthru
          _
        // Predicated region
        $region49: #{attend_feedforward.1} parent=31 // pred_check
          %p374 = pneg %p232
        $region50: #{attend_feedforward.1} parent=31 // pred_check_branch
          %376 = sbr.rel (%p374) target = $region52
        $region51: #{attend_feedforward.1} parent=31 // pred_region
          %p377 = scmp.lt.s32.totalorder %s24, 1
          %s378 = scalar_select %p377, %s24, 1
          %s379 = scalar_lea.vmem %s8, %s378
        $region52: #{attend_feedforward.1} parent=31 // pred_fallthru
          _
        // Predicated region
        $region53: #{attend_feedforward.1} parent=31 // pred_check
          %p380 = pneg %p258
        $region54: #{attend_feedforward.1} parent=31 // pred_check_branch
          %382 = sbr.rel (%p380) target = $region56
        $region55: #{attend_feedforward.1} parent=31 // pred_region
          %p383 = scmp.lt.s32.totalorder %s24, 1
          %s384 = scalar_select %p383, %s24, 1
          %s385 = smul.addr %s384, 8
          %s386 = scalar_lea.vmem %s9, %s385
        $region56: #{attend_feedforward.1} parent=31 // pred_fallthru
          _
      $region32: #{attend_feedforward.1} parent=5 // pred_fallthru
        _
      %p387 = scmp.le.s32.totalorder 1, %s24
      %p388 = scmp.lt.s32.totalorder %s24, 3
      %p389 = pnand %p387, %p388
      %p390 = pneg %p389
      // Predicated region
      $region57: #{attend_feedforward.1} parent=5 // pred_check
        _
      $region58: #{attend_feedforward.1} parent=5 // pred_check_branch
        %392 = sbr.rel (%p389) target = $region60
      $region59: #{attend_feedforward.1} parent=5 // pred_region
        %s393 = ssub.s32 %s24, 1
        %p394 = scmp.lt.s32.totalorder %s29, 1
        %s395 = scalar_select %p394, %s29, 1
        %s396 = smul.addr %s395, 8
        %s397 = scalar_lea.vmem %s0, %s396
        %p398 = pneg %p50
        %p399 = pneg %p47
        %p400 = scmp.lt.s32.totalorder %s29, 1
        %s401 = scalar_select %p400, %s29, 1
        %s402 = smul.addr %s401, 8
        %s403 = scalar_lea.vmem %s1, %s402
        %p404 = pneg %p76
        %p405 = pneg %p73
        %p406 = pneg %p97
        %p407 = pneg %p94
        %p408 = pneg %p118
        %p409 = pneg %p115
        %p410 = pneg %p139
        %p411 = pneg %p136
        %p412 = pneg %p160
        %p413 = pneg %p157
        %p414 = scmp.lt.s32.totalorder %s29, 1
        %s415 = scalar_select %p414, %s29, 1
        %s416 = scalar_lea.vmem %s6, %s415
        %p417 = pneg %p186
        %p418 = pneg %p183
        %p419 = scmp.lt.s32.totalorder %s29, 1
        %s420 = scalar_select %p419, %s29, 1
        %s421 = smul.addr %s420, 8
        %s422 = scalar_lea.vmem %s7, %s421
        %p423 = pneg %p212
        %p424 = pneg %p209
        %p425 = scmp.lt.s32.totalorder %s29, 1
        %s426 = scalar_select %p425, %s29, 1
        %s427 = scalar_lea.vmem %s8, %s426
        %p428 = pneg %p238
        %p429 = pneg %p235
        %p430 = scmp.lt.s32.totalorder %s29, 1
        %s431 = scalar_select %p430, %s29, 1
        %s432 = smul.addr %s431, 8
        %s433 = scalar_lea.vmem %s9, %s432
        %p434 = pneg %p264
        %p435 = pneg %p261
        %p436 = pneg %p290
        %p437 = pneg %p287
        %s438 = sand.u32 %s277, 1
        %s439 = scalar_lea.sflag [#allocation3], %s438
        %s440 = sand.u32 %s277, 1
        %s441 = smul.addr %s440, 8
        %s442 = scalar_lea.vmem [#allocation2], %s441
        %p443 = pneg %p316
        %p444 = pneg %p313
        %s445 = sand.u32 %s303, 1
        %s446 = scalar_lea.sflag [#allocation5], %s445
        %s447 = sand.u32 %s303, 1
        %s448 = smul.addr %s447, 8
        %s449 = scalar_lea.vmem [#allocation4], %s448
        %p450 = scmp.lt.s32.totalorder %s29, 1
        %s451 = scalar_select %p450, %s29, 1
        %s452 = smul.addr %s451, 8
        %s453 = scalar_lea.vmem %s0, %s452
        %p454 = scmp.lt.s32.totalorder %s29, 1
        %s455 = scalar_select %p454, %s29, 1
        %s456 = smul.addr %s455, 8
        %s457 = scalar_lea.vmem %s1, %s456
        %p458 = scmp.lt.s32.totalorder %s29, 1
        %s459 = scalar_select %p458, %s29, 1
        %s460 = scalar_lea.vmem %s6, %s459
        %p461 = scmp.lt.s32.totalorder %s29, 1
        %s462 = scalar_select %p461, %s29, 1
        %s463 = smul.addr %s462, 8
        %s464 = scalar_lea.vmem %s7, %s463
        %p465 = scmp.lt.s32.totalorder %s29, 1
        %s466 = scalar_select %p465, %s29, 1
        %s467 = scalar_lea.vmem %s8, %s466
        %p468 = scmp.lt.s32.totalorder %s29, 1
        %s469 = scalar_select %p468, %s29, 1
        %s470 = smul.addr %s469, 8
        %s471 = scalar_lea.vmem %s9, %s470
        %v472 = vld [vmem:[%s2] sm:$0xff]
        %v473 = vld [vmem:[%s2 + $0x8] sm:$0xff]
        %v474 = vld [vmem:[%s2 + $0x10] sm:$0xff]
        %v475 = vld [vmem:[%s2 + $0x18] sm:$0xff]
        %v476 = vld [vmem:[%s2 + $0x20] sm:$0xff]
        %v477 = vld [vmem:[%s2 + $0x28] sm:$0xff]
        %v478 = vld [vmem:[%s2 + $0x30] sm:$0xff]
        %v479 = vld [vmem:[%s2 + $0x38] sm:$0xff]
        %v480 = vld [vmem:[%s2 + $0x40] sm:$0xff]
        %v481 = vld [vmem:[%s2 + $0x48] sm:$0xff]
        %v482 = vld [vmem:[%s2 + $0x50] sm:$0xff]
        %v483 = vld [vmem:[%s2 + $0x58] sm:$0xff]
        %v484 = vld [vmem:[%s2 + $0x60] sm:$0xff]
        %v485 = vld [vmem:[%s2 + $0x68] sm:$0xff]
        %v486 = vld [vmem:[%s2 + $0x70] sm:$0xff]
        %v487 = vld [vmem:[%s2 + $0x78] sm:$0xff]
        %v488 = vld [vmem:[%s3] sm:$0x1]
        %v489 = vld [vmem:[%s4] sm:$0xff]
        %v490 = vld [vmem:[%s4 + $0x8] sm:$0xff]
        %v491 = vld [vmem:[%s4 + $0x10] sm:$0xff]
        %v492 = vld [vmem:[%s4 + $0x18] sm:$0xff]
        %v493 = vld [vmem:[%s4 + $0x20] sm:$0xff]
        %v494 = vld [vmem:[%s4 + $0x28] sm:$0xff]
        %v495 = vld [vmem:[%s4 + $0x30] sm:$0xff]
        %v496 = vld [vmem:[%s4 + $0x38] sm:$0xff]
        %v497 = vld [vmem:[%s4 + $0x40] sm:$0xff]
        %v498 = vld [vmem:[%s4 + $0x48] sm:$0xff]
        %v499 = vld [vmem:[%s4 + $0x50] sm:$0xff]
        %v500 = vld [vmem:[%s4 + $0x58] sm:$0xff]
        %v501 = vld [vmem:[%s4 + $0x60] sm:$0xff]
        %v502 = vld [vmem:[%s4 + $0x68] sm:$0xff]
        %v503 = vld [vmem:[%s4 + $0x70] sm:$0xff]
        %v504 = vld [vmem:[%s4 + $0x78] sm:$0xff]
        %v505 = vld [vmem:[%s5] sm:$0x1]
        %v506 = vld [vmem:[%s453] sm:$0xff]
        %v507 = vld [vmem:[%s457] sm:$0xff]
        %v509 = vlaneseq
        %v510 = vshrl.u32 %v509, 7
        %v511 = vsub.s32 0, %v510
        %v512 = vrot.slane %v488, %v511
        %514 = vmatprep.subr.mxu0 0.0
        %515 = vmatpush1.msra.mxu0 %v487
        %516 = vmatprep.subr.mxu0 0.0
        %517 = vmatpush1.msra.mxu0 %v486
        %518 = vmatprep.subr.mxu0 0.0
        %519 = vmatpush1.msra.mxu0 %v485
        %520 = vmatprep.subr.mxu0 0.0
        %521 = vmatpush1.msra.mxu0 %v484
        %522 = vmatprep.subr.mxu0 0.0
        %523 = vmatpush1.msra.mxu0 %v483
        %524 = vmatprep.subr.mxu0 0.0
        %525 = vmatpush1.msra.mxu0 %v482
        %526 = vmatprep.subr.mxu0 0.0
        %527 = vmatpush1.msra.mxu0 %v481
        %528 = vmatprep.subr.mxu0 0.0
        %529 = vmatpush1.msra.mxu0 %v480
        %530 = vmatprep.subr.mxu0 0.0
        %531 = vmatpush1.msra.mxu0 %v479
        %532 = vmatprep.subr.mxu0 0.0
        %533 = vmatpush1.msra.mxu0 %v478
        %534 = vmatprep.subr.mxu0 0.0
        %535 = vmatpush1.msra.mxu0 %v477
        %536 = vmatprep.subr.mxu0 0.0
        %537 = vmatpush1.msra.mxu0 %v476
        %538 = vmatprep.subr.mxu0 0.0
        %539 = vmatpush1.msra.mxu0 %v475
        %540 = vmatprep.subr.mxu0 0.0
        %541 = vmatpush1.msra.mxu0 %v474
        %542 = vmatprep.subr.mxu0 0.0
        %543 = vmatpush1.msra.mxu0 %v473
        %544 = vmatprep.subr.mxu0 0.0
        %545 = vmatpush1.msra.mxu0 %v472
        %546 = vmatprep.subr.mxu0 0.0
        %547 = vmatpush2.msra.mxu0 0.0
        %548 = vmatprep.subr.mxu0 0.0
        %549 = vmatpush2.msra.mxu0 0.0
        %550 = vmatprep.subr.mxu0 0.0
        %551 = vmatpush2.msra.mxu0 0.0
        %552 = vmatprep.subr.mxu0 0.0
        %553 = vmatpush2.msra.mxu0 0.0
        %554 = vmatprep.subr.mxu0 0.0
        %555 = vmatpush2.msra.mxu0 0.0
        %556 = vmatprep.subr.mxu0 0.0
        %557 = vmatpush2.msra.mxu0 0.0
        %558 = vmatprep.subr.mxu0 0.0
        %559 = vmatpush2.msra.mxu0 0.0
        %560 = vmatprep.subr.mxu0 0.0
        %561 = vmatpush2.msra.mxu0 0.0
        %562 = vmatprep.subr.mxu0 0.0
        %563 = vmatpush2.msra.mxu0 0.0
        %564 = vmatprep.subr.mxu0 0.0
        %565 = vmatpush2.msra.mxu0 0.0
        %566 = vmatprep.subr.mxu0 0.0
        %567 = vmatpush2.msra.mxu0 0.0
        %568 = vmatprep.subr.mxu0 0.0
        %569 = vmatpush2.msra.mxu0 0.0
        %570 = vmatprep.subr.mxu0 0.0
        %571 = vmatpush2.msra.mxu0 0.0
        %572 = vmatprep.subr.mxu0 0.0
        %573 = vmatpush2.msra.mxu0 0.0
        %574 = vmatprep.subr.mxu0 0.0
        %575 = vmatpush2.msra.mxu0 0.0
        %576 = vmatprep.subr.mxu0 0.0
        %577 = vmatpush2.msra.mxu0 0.0
        %578 = vmatprep.mubr.f32.mxu0 0.0
        %579 = vmatmul.mubr.f32.gmra.mxu0 %v506
        %v580 = vpop.f32.mrf.mxu0
        %v581 = vadd.f32 %v512, %v580
        %v582 = vpop.f32.mrf.mxu0
        %583 = vdwg.mxu0
        %v584 = vmax.f32 %v581, 0.0
        %v586 = vlaneseq
        %v587 = vshrl.u32 %v586, 7
        %v588 = vsub.s32 0, %v587
        %v589 = vrot.slane %v505, %v588
        %591 = vmatprep.subr.mxu0 0.0
        %592 = vmatpush1.msra.mxu0 %v504
        %593 = vmatprep.subr.mxu0 0.0
        %594 = vmatpush1.msra.mxu0 %v503
        %595 = vmatprep.subr.mxu0 0.0
        %596 = vmatpush1.msra.mxu0 %v502
        %597 = vmatprep.subr.mxu0 0.0
        %598 = vmatpush1.msra.mxu0 %v501
        %599 = vmatprep.subr.mxu0 0.0
        %600 = vmatpush1.msra.mxu0 %v500
        %601 = vmatprep.subr.mxu0 0.0
        %602 = vmatpush1.msra.mxu0 %v499
        %603 = vmatprep.subr.mxu0 0.0
        %604 = vmatpush1.msra.mxu0 %v498
        %605 = vmatprep.subr.mxu0 0.0
        %606 = vmatpush1.msra.mxu0 %v497
        %607 = vmatprep.subr.mxu0 0.0
        %608 = vmatpush1.msra.mxu0 %v496
        %609 = vmatprep.subr.mxu0 0.0
        %610 = vmatpush1.msra.mxu0 %v495
        %611 = vmatprep.subr.mxu0 0.0
        %612 = vmatpush1.msra.mxu0 %v494
        %613 = vmatprep.subr.mxu0 0.0
        %614 = vmatpush1.msra.mxu0 %v493
        %615 = vmatprep.subr.mxu0 0.0
        %616 = vmatpush1.msra.mxu0 %v492
        %617 = vmatprep.subr.mxu0 0.0
        %618 = vmatpush1.msra.mxu0 %v491
        %619 = vmatprep.subr.mxu0 0.0
        %620 = vmatpush1.msra.mxu0 %v490
        %621 = vmatprep.subr.mxu0 0.0
        %622 = vmatpush1.msra.mxu0 %v489
        %623 = vmatprep.subr.mxu0 0.0
        %624 = vmatpush2.msra.mxu0 0.0
        %625 = vmatprep.subr.mxu0 0.0
        %626 = vmatpush2.msra.mxu0 0.0
        %627 = vmatprep.subr.mxu0 0.0
        %628 = vmatpush2.msra.mxu0 0.0
        %629 = vmatprep.subr.mxu0 0.0
        %630 = vmatpush2.msra.mxu0 0.0
        %631 = vmatprep.subr.mxu0 0.0
        %632 = vmatpush2.msra.mxu0 0.0
        %633 = vmatprep.subr.mxu0 0.0
        %634 = vmatpush2.msra.mxu0 0.0
        %635 = vmatprep.subr.mxu0 0.0
        %636 = vmatpush2.msra.mxu0 0.0
        %637 = vmatprep.subr.mxu0 0.0
        %638 = vmatpush2.msra.mxu0 0.0
        %639 = vmatprep.subr.mxu0 0.0
        %640 = vmatpush2.msra.mxu0 0.0
        %641 = vmatprep.subr.mxu0 0.0
        %642 = vmatpush2.msra.mxu0 0.0
        %643 = vmatprep.subr.mxu0 0.0
        %644 = vmatpush2.msra.mxu0 0.0
        %645 = vmatprep.subr.mxu0 0.0
        %646 = vmatpush2.msra.mxu0 0.0
        %647 = vmatprep.subr.mxu0 0.0
        %648 = vmatpush2.msra.mxu0 0.0
        %649 = vmatprep.subr.mxu0 0.0
        %650 = vmatpush2.msra.mxu0 0.0
        %651 = vmatprep.subr.mxu0 0.0
        %652 = vmatpush2.msra.mxu0 0.0
        %653 = vmatprep.subr.mxu0 0.0
        %654 = vmatpush2.msra.mxu0 0.0
        %655 = vmatprep.mubr.f32.mxu0 0.0
        %656 = vmatmul.mubr.f32.gmra.mxu0 %v584
        %v657 = vpop.f32.mrf.mxu0
        %v658 = vadd.f32 %v589, %v657
        %v659 = vpop.f32.mrf.mxu0
        %660 = vdwg.mxu0
        %v661 = vmax.f32 %v658, 0.0
        %662 = vmatprep.subr.mxu0 0.0
        %663 = vmatpush1.msra.mxu0 %v487
        %664 = vmatprep.subr.mxu0 0.0
        %665 = vmatpush1.msra.mxu0 %v486
        %666 = vmatprep.subr.mxu0 0.0
        %667 = vmatpush1.msra.mxu0 %v485
        %668 = vmatprep.subr.mxu0 0.0
        %669 = vmatpush1.msra.mxu0 %v484
        %670 = vmatprep.subr.mxu0 0.0
        %671 = vmatpush1.msra.mxu0 %v483
        %672 = vmatprep.subr.mxu0 0.0
        %673 = vmatpush1.msra.mxu0 %v482
        %674 = vmatprep.subr.mxu0 0.0
        %675 = vmatpush1.msra.mxu0 %v481
        %676 = vmatprep.subr.mxu0 0.0
        %677 = vmatpush1.msra.mxu0 %v480
        %678 = vmatprep.subr.mxu0 0.0
        %679 = vmatpush1.msra.mxu0 %v479
        %680 = vmatprep.subr.mxu0 0.0
        %681 = vmatpush1.msra.mxu0 %v478
        %682 = vmatprep.subr.mxu0 0.0
        %683 = vmatpush1.msra.mxu0 %v477
        %684 = vmatprep.subr.mxu0 0.0
        %685 = vmatpush1.msra.mxu0 %v476
        %686 = vmatprep.subr.mxu0 0.0
        %687 = vmatpush1.msra.mxu0 %v475
        %688 = vmatprep.subr.mxu0 0.0
        %689 = vmatpush1.msra.mxu0 %v474
        %690 = vmatprep.subr.mxu0 0.0
        %691 = vmatpush1.msra.mxu0 %v473
        %692 = vmatprep.subr.mxu0 0.0
        %693 = vmatpush1.msra.mxu0 %v472
        %694 = vmatprep.subr.mxu0 0.0
        %695 = vmatpush2.msra.mxu0 0.0
        %696 = vmatprep.subr.mxu0 0.0
        %697 = vmatpush2.msra.mxu0 0.0
        %698 = vmatprep.subr.mxu0 0.0
        %699 = vmatpush2.msra.mxu0 0.0
        %700 = vmatprep.subr.mxu0 0.0
        %701 = vmatpush2.msra.mxu0 0.0
        %702 = vmatprep.subr.mxu0 0.0
        %703 = vmatpush2.msra.mxu0 0.0
        %704 = vmatprep.subr.mxu0 0.0
        %705 = vmatpush2.msra.mxu0 0.0
        %706 = vmatprep.subr.mxu0 0.0
        %707 = vmatpush2.msra.mxu0 0.0
        %708 = vmatprep.subr.mxu0 0.0
        %709 = vmatpush2.msra.mxu0 0.0
        %710 = vmatprep.subr.mxu0 0.0
        %711 = vmatpush2.msra.mxu0 0.0
        %712 = vmatprep.subr.mxu0 0.0
        %713 = vmatpush2.msra.mxu0 0.0
        %714 = vmatprep.subr.mxu0 0.0
        %715 = vmatpush2.msra.mxu0 0.0
        %716 = vmatprep.subr.mxu0 0.0
        %717 = vmatpush2.msra.mxu0 0.0
        %718 = vmatprep.subr.mxu0 0.0
        %719 = vmatpush2.msra.mxu0 0.0
        %720 = vmatprep.subr.mxu0 0.0
        %721 = vmatpush2.msra.mxu0 0.0
        %722 = vmatprep.subr.mxu0 0.0
        %723 = vmatpush2.msra.mxu0 0.0
        %724 = vmatprep.subr.mxu0 0.0
        %725 = vmatpush2.msra.mxu0 0.0
        %726 = vmatprep.mubr.f32.mxu0 0.0
        %727 = vmatmul.mubr.f32.gmra.mxu0 %v507
        %v728 = vpop.f32.mrf.mxu0
        %v729 = vadd.f32 %v512, %v728
        %v730 = vpop.f32.mrf.mxu0
        %731 = vdwg.mxu0
        %v732 = vmax.f32 %v729, 0.0
        %733 = vmatprep.subr.mxu0 0.0
        %734 = vmatpush1.msra.mxu0 %v504
        %735 = vmatprep.subr.mxu0 0.0
        %736 = vmatpush1.msra.mxu0 %v503
        %737 = vmatprep.subr.mxu0 0.0
        %738 = vmatpush1.msra.mxu0 %v502
        %739 = vmatprep.subr.mxu0 0.0
        %740 = vmatpush1.msra.mxu0 %v501
        %741 = vmatprep.subr.mxu0 0.0
        %742 = vmatpush1.msra.mxu0 %v500
        %743 = vmatprep.subr.mxu0 0.0
        %744 = vmatpush1.msra.mxu0 %v499
        %745 = vmatprep.subr.mxu0 0.0
        %746 = vmatpush1.msra.mxu0 %v498
        %747 = vmatprep.subr.mxu0 0.0
        %748 = vmatpush1.msra.mxu0 %v497
        %749 = vmatprep.subr.mxu0 0.0
        %750 = vmatpush1.msra.mxu0 %v496
        %751 = vmatprep.subr.mxu0 0.0
        %752 = vmatpush1.msra.mxu0 %v495
        %753 = vmatprep.subr.mxu0 0.0
        %754 = vmatpush1.msra.mxu0 %v494
        %755 = vmatprep.subr.mxu0 0.0
        %756 = vmatpush1.msra.mxu0 %v493
        %757 = vmatprep.subr.mxu0 0.0
        %758 = vmatpush1.msra.mxu0 %v492
        %759 = vmatprep.subr.mxu0 0.0
        %760 = vmatpush1.msra.mxu0 %v491
        %761 = vmatprep.subr.mxu0 0.0
        %762 = vmatpush1.msra.mxu0 %v490
        %763 = vmatprep.subr.mxu0 0.0
        %764 = vmatpush1.msra.mxu0 %v489
        %765 = vmatprep.subr.mxu0 0.0
        %766 = vmatpush2.msra.mxu0 0.0
        %767 = vmatprep.subr.mxu0 0.0
        %768 = vmatpush2.msra.mxu0 0.0
        %769 = vmatprep.subr.mxu0 0.0
        %770 = vmatpush2.msra.mxu0 0.0
        %771 = vmatprep.subr.mxu0 0.0
        %772 = vmatpush2.msra.mxu0 0.0
        %773 = vmatprep.subr.mxu0 0.0
        %774 = vmatpush2.msra.mxu0 0.0
        %775 = vmatprep.subr.mxu0 0.0
        %776 = vmatpush2.msra.mxu0 0.0
        %777 = vmatprep.subr.mxu0 0.0
        %778 = vmatpush2.msra.mxu0 0.0
        %779 = vmatprep.subr.mxu0 0.0
        %780 = vmatpush2.msra.mxu0 0.0
        %781 = vmatprep.subr.mxu0 0.0
        %782 = vmatpush2.msra.mxu0 0.0
        %783 = vmatprep.subr.mxu0 0.0
        %784 = vmatpush2.msra.mxu0 0.0
        %785 = vmatprep.subr.mxu0 0.0
        %786 = vmatpush2.msra.mxu0 0.0
        %787 = vmatprep.subr.mxu0 0.0
        %788 = vmatpush2.msra.mxu0 0.0
        %789 = vmatprep.subr.mxu0 0.0
        %790 = vmatpush2.msra.mxu0 0.0
        %791 = vmatprep.subr.mxu0 0.0
        %792 = vmatpush2.msra.mxu0 0.0
        %793 = vmatprep.subr.mxu0 0.0
        %794 = vmatpush2.msra.mxu0 0.0
        %795 = vmatprep.subr.mxu0 0.0
        %796 = vmatpush2.msra.mxu0 0.0
        %797 = vmatprep.mubr.f32.mxu0 0.0
        %798 = vmatmul.mubr.f32.gmra.mxu0 %v732
        %v799 = vpop.f32.mrf.mxu0
        %v800 = vadd.f32 %v589, %v799
        %v801 = vpop.f32.mrf.mxu0
        %802 = vdwg.mxu0
        %v803 = vmax.f32 %v800, 0.0
        %804 = vmatprep.subr.mxu0 0.0
        %805 = vmatpush1.xpose.msra.mxu0 0.0
        %806 = vmatprep.subr.mxu0 0.0
        %807 = vmatpush1.xpose.msra.mxu0 0.0
        %808 = vmatprep.subr.mxu0 0.0
        %809 = vmatpush1.xpose.msra.mxu0 0.0
        %810 = vmatprep.subr.mxu0 0.0
        %811 = vmatpush1.xpose.msra.mxu0 0.0
        %812 = vmatprep.subr.mxu0 0.0
        %813 = vmatpush1.xpose.msra.mxu0 0.0
        %814 = vmatprep.subr.mxu0 0.0
        %815 = vmatpush1.xpose.msra.mxu0 0.0
        %816 = vmatprep.subr.mxu0 0.0
        %817 = vmatpush1.xpose.msra.mxu0 0.0
        %818 = vmatprep.subr.mxu0 0.0
        %819 = vmatpush1.xpose.msra.mxu0 0.0
        %820 = vmatprep.subr.mxu0 0.0
        %821 = vmatpush1.xpose.msra.mxu0 0.0
        %822 = vmatprep.subr.mxu0 0.0
        %823 = vmatpush1.xpose.msra.mxu0 0.0
        %824 = vmatprep.subr.mxu0 0.0
        %825 = vmatpush1.xpose.msra.mxu0 0.0
        %826 = vmatprep.subr.mxu0 0.0
        %827 = vmatpush1.xpose.msra.mxu0 0.0
        %828 = vmatprep.subr.mxu0 0.0
        %829 = vmatpush1.xpose.msra.mxu0 0.0
        %830 = vmatprep.subr.mxu0 0.0
        %831 = vmatpush1.xpose.msra.mxu0 0.0
        %832 = vmatprep.subr.mxu0 0.0
        %833 = vmatpush1.xpose.msra.mxu0 0.0
        %834 = vmatprep.subr.mxu0 0.0
        %835 = vmatpush1.xpose.msra.mxu0 %v803
        %836 = vmatprep.subr.mxu0 0.0
        %837 = vmatpush2.xpose.msra.mxu0 0.0
        %838 = vmatprep.subr.mxu0 0.0
        %839 = vmatpush2.xpose.msra.mxu0 0.0
        %840 = vmatprep.subr.mxu0 0.0
        %841 = vmatpush2.xpose.msra.mxu0 0.0
        %842 = vmatprep.subr.mxu0 0.0
        %843 = vmatpush2.xpose.msra.mxu0 0.0
        %844 = vmatprep.subr.mxu0 0.0
        %845 = vmatpush2.xpose.msra.mxu0 0.0
        %846 = vmatprep.subr.mxu0 0.0
        %847 = vmatpush2.xpose.msra.mxu0 0.0
        %848 = vmatprep.subr.mxu0 0.0
        %849 = vmatpush2.xpose.msra.mxu0 0.0
        %850 = vmatprep.subr.mxu0 0.0
        %851 = vmatpush2.xpose.msra.mxu0 0.0
        %852 = vmatprep.subr.mxu0 0.0
        %853 = vmatpush2.xpose.msra.mxu0 0.0
        %854 = vmatprep.subr.mxu0 0.0
        %855 = vmatpush2.xpose.msra.mxu0 0.0
        %856 = vmatprep.subr.mxu0 0.0
        %857 = vmatpush2.xpose.msra.mxu0 0.0
        %858 = vmatprep.subr.mxu0 0.0
        %859 = vmatpush2.xpose.msra.mxu0 0.0
        %860 = vmatprep.subr.mxu0 0.0
        %861 = vmatpush2.xpose.msra.mxu0 0.0
        %862 = vmatprep.subr.mxu0 0.0
        %863 = vmatpush2.xpose.msra.mxu0 0.0
        %864 = vmatprep.subr.mxu0 0.0
        %865 = vmatpush2.xpose.msra.mxu0 0.0
        %866 = vmatprep.subr.mxu0 0.0
        %867 = vmatpush2.xpose.msra.mxu0 0.0
        %868 = vmatprep.mubr.f32.mxu0 0.0
        %869 = vmatmul.mubr.f32.gmra.mxu0 %v661
        %v870 = vpop.f32.mrf.mxu0
        %v871 = vadd.f32 0.0, %v870
        %v872 = vpop.f32.mrf.mxu0
        %873 = vdwg.mxu0
        %874 = vxpose.xlu0.b32.start [1/16] %v871, 128
        %875 = vxpose.xlu0.b32.cont [2/16] 0.0, 128
        %876 = vxpose.xlu0.b32.cont [3/16] 0.0, 128
        %877 = vxpose.xlu0.b32.cont [4/16] 0.0, 128
        %878 = vxpose.xlu0.b32.cont [5/16] 0.0, 128
        %879 = vxpose.xlu0.b32.cont [6/16] 0.0, 128
        %880 = vxpose.xlu0.b32.cont [7/16] 0.0, 128
        %881 = vxpose.xlu0.b32.cont [8/16] 0.0, 128
        %882 = vxpose.xlu0.b32.cont [9/16] 0.0, 128
        %883 = vxpose.xlu0.b32.cont [10/16] 0.0, 128
        %884 = vxpose.xlu0.b32.cont [11/16] 0.0, 128
        %885 = vxpose.xlu0.b32.cont [12/16] 0.0, 128
        %886 = vxpose.xlu0.b32.cont [13/16] 0.0, 128
        %887 = vxpose.xlu0.b32.cont [14/16] 0.0, 128
        %888 = vxpose.xlu0.b32.cont [15/16] 0.0, 128
        %889 = vxpose.xlu0.b32.end [16/16] 0.0, 128
        %v890 = vpop.trf.xlu0
        %v891 = vpop.trf.xlu0
        %v892 = vpop.trf.xlu0
        %v893 = vpop.trf.xlu0
        %v894 = vpop.trf.xlu0
        %v895 = vpop.trf.xlu0
        %v896 = vpop.trf.xlu0
        %v897 = vpop.trf.xlu0
        %v898 = vpop.trf.xlu0
        %v899 = vpop.trf.xlu0
        %v900 = vpop.trf.xlu0
        %v901 = vpop.trf.xlu0
        %v902 = vpop.trf.xlu0
        %v903 = vpop.trf.xlu0
        %v904 = vpop.trf.xlu0
        %v905 = vpop.trf.xlu0
        %v906 = vld [vmem:[%s460] sm:$0x1]
        %v908 = vlaneseq
        %v909 = vshrl.u32 %v908, 7
        %v910 = vsub.s32 0, %v909
        %v911 = vrot.slane %v906, %v910
        %v913 = vmul.f32 %v890, %v911
        %vm914 = vcmask 64512
        %v915 = vsel %vm914, %v913, -inf
        %916 = vmax.xlane.f32.xlu0 %v915
        %v917 = vpop.xlane.xlu0 %916
        %v918 = vsub.f32 %v913, %v917
        %v919 = vmul.f32 %v918, 1.442695
        %v920 = vpow.pop %v919
        %v921 = vsel %vm914, %v920, 0.0
        %922 = vadd.xlane.f32.xlu0 %v921
        %v923 = vpop.xlane.xlu0 %922
        %v924 = vrcp.pop %v923
        %v925 = vmul.f32 %v920, %v924
        %v926 = vld [vmem:[%s467] sm:$0x1]
        %v928 = vlaneseq
        %v929 = vshrl.u32 %v928, 7
        %v930 = vsub.s32 0, %v929
        %v931 = vrot.slane %v926, %v930
        %v933 = vmul.f32 %v871, %v931
        %v934 = vsel %vm914, %v933, -inf
        %935 = vmax.xlane.f32.xlu0 %v934
        %v936 = vpop.xlane.xlu0 %935
        %v937 = vsub.f32 %v933, %v936
        %v938 = vmul.f32 %v937, 1.442695
        %v939 = vpow.pop %v938
        %v940 = vsel %vm914, %v939, 0.0
        %941 = vadd.xlane.f32.xlu0 %v940
        %v942 = vpop.xlane.xlu0 %941
        %v943 = vrcp.pop %v942
        %v944 = vmul.f32 %v939, %v943
        %v946 = vsel %vm914, %v925, 0
        %948 = vmatprep.subr.mxu0 0.0
        %949 = vmatpush1.msra.mxu0 0.0
        %950 = vmatprep.subr.mxu0 0.0
        %951 = vmatpush1.msra.mxu0 0.0
        %952 = vmatprep.subr.mxu0 0.0
        %953 = vmatpush1.msra.mxu0 0.0
        %954 = vmatprep.subr.mxu0 0.0
        %955 = vmatpush1.msra.mxu0 0.0
        %956 = vmatprep.subr.mxu0 0.0
        %957 = vmatpush1.msra.mxu0 0.0
        %958 = vmatprep.subr.mxu0 0.0
        %959 = vmatpush1.msra.mxu0 0.0
        %960 = vmatprep.subr.mxu0 0.0
        %961 = vmatpush1.msra.mxu0 0.0
        %962 = vmatprep.subr.mxu0 0.0
        %963 = vmatpush1.msra.mxu0 0.0
        %964 = vmatprep.subr.mxu0 0.0
        %965 = vmatpush1.msra.mxu0 0.0
        %966 = vmatprep.subr.mxu0 0.0
        %967 = vmatpush1.msra.mxu0 0.0
        %968 = vmatprep.subr.mxu0 0.0
        %969 = vmatpush1.msra.mxu0 0.0
        %970 = vmatprep.subr.mxu0 0.0
        %971 = vmatpush1.msra.mxu0 0.0
        %972 = vmatprep.subr.mxu0 0.0
        %973 = vmatpush1.msra.mxu0 0.0
        %974 = vmatprep.subr.mxu0 0.0
        %975 = vmatpush1.msra.mxu0 0.0
        %976 = vmatprep.subr.mxu0 0.0
        %977 = vmatpush1.msra.mxu0 0.0
        %978 = vmatprep.subr.mxu0 0.0
        %979 = vmatpush1.msra.mxu0 %v506
        %980 = vmatprep.subr.mxu0 0.0
        %981 = vmatpush2.msra.mxu0 0.0
        %982 = vmatprep.subr.mxu0 0.0
        %983 = vmatpush2.msra.mxu0 0.0
        %984 = vmatprep.subr.mxu0 0.0
        %985 = vmatpush2.msra.mxu0 0.0
        %986 = vmatprep.subr.mxu0 0.0
        %987 = vmatpush2.msra.mxu0 0.0
        %988 = vmatprep.subr.mxu0 0.0
        %989 = vmatpush2.msra.mxu0 0.0
        %990 = vmatprep.subr.mxu0 0.0
        %991 = vmatpush2.msra.mxu0 0.0
        %992 = vmatprep.subr.mxu0 0.0
        %993 = vmatpush2.msra.mxu0 0.0
        %994 = vmatprep.subr.mxu0 0.0
        %995 = vmatpush2.msra.mxu0 0.0
        %996 = vmatprep.subr.mxu0 0.0
        %997 = vmatpush2.msra.mxu0 0.0
        %998 = vmatprep.subr.mxu0 0.0
        %999 = vmatpush2.msra.mxu0 0.0
        %1000 = vmatprep.subr.mxu0 0.0
        %1001 = vmatpush2.msra.mxu0 0.0
        %1002 = vmatprep.subr.mxu0 0.0
        %1003 = vmatpush2.msra.mxu0 0.0
        %1004 = vmatprep.subr.mxu0 0.0
        %1005 = vmatpush2.msra.mxu0 0.0
        %1006 = vmatprep.subr.mxu0 0.0
        %1007 = vmatpush2.msra.mxu0 0.0
        %1008 = vmatprep.subr.mxu0 0.0
        %1009 = vmatpush2.msra.mxu0 0.0
        %1010 = vmatprep.subr.mxu0 0.0
        %1011 = vmatpush2.msra.mxu0 0.0
        %1012 = vmatprep.mubr.f32.mxu0 0.0
        %1013 = vmatmul.mubr.f32.gmra.mxu0 %v946
        %v1014 = vpop.f32.mrf.mxu0
        %v1015 = vadd.f32 0.0, %v1014
        %v1016 = vpop.f32.mrf.mxu0
        %1017 = vdwg.mxu0
        %v1018 = vld [vmem:[%s471] sm:$0xff]
        %1020 = vset.pattern.permute.xlu0 0
        %1021 = vperm.xlu0 %1020, %v1018
        %v1022 = vpop.permute.xlu0 %1021
        %v1024 = vmul.f32 %v1015, %v1022
        %1025 = vst [vmem:[%s442] sm:$0xff] %v1024
        %v1027 = vsel %vm914, %v944, 0
        %1029 = vmatprep.subr.mxu0 0.0
        %1030 = vmatpush1.msra.mxu0 0.0
        %1031 = vmatprep.subr.mxu0 0.0
        %1032 = vmatpush1.msra.mxu0 0.0
        %1033 = vmatprep.subr.mxu0 0.0
        %1034 = vmatpush1.msra.mxu0 0.0
        %1035 = vmatprep.subr.mxu0 0.0
        %1036 = vmatpush1.msra.mxu0 0.0
        %1037 = vmatprep.subr.mxu0 0.0
        %1038 = vmatpush1.msra.mxu0 0.0
        %1039 = vmatprep.subr.mxu0 0.0
        %1040 = vmatpush1.msra.mxu0 0.0
        %1041 = vmatprep.subr.mxu0 0.0
        %1042 = vmatpush1.msra.mxu0 0.0
        %1043 = vmatprep.subr.mxu0 0.0
        %1044 = vmatpush1.msra.mxu0 0.0
        %1045 = vmatprep.subr.mxu0 0.0
        %1046 = vmatpush1.msra.mxu0 0.0
        %1047 = vmatprep.subr.mxu0 0.0
        %1048 = vmatpush1.msra.mxu0 0.0
        %1049 = vmatprep.subr.mxu0 0.0
        %1050 = vmatpush1.msra.mxu0 0.0
        %1051 = vmatprep.subr.mxu0 0.0
        %1052 = vmatpush1.msra.mxu0 0.0
        %1053 = vmatprep.subr.mxu0 0.0
        %1054 = vmatpush1.msra.mxu0 0.0
        %1055 = vmatprep.subr.mxu0 0.0
        %1056 = vmatpush1.msra.mxu0 0.0
        %1057 = vmatprep.subr.mxu0 0.0
        %1058 = vmatpush1.msra.mxu0 0.0
        %1059 = vmatprep.subr.mxu0 0.0
        %1060 = vmatpush1.msra.mxu0 %v507
        %1061 = vmatprep.subr.mxu0 0.0
        %1062 = vmatpush2.msra.mxu0 0.0
        %1063 = vmatprep.subr.mxu0 0.0
        %1064 = vmatpush2.msra.mxu0 0.0
        %1065 = vmatprep.subr.mxu0 0.0
        %1066 = vmatpush2.msra.mxu0 0.0
        %1067 = vmatprep.subr.mxu0 0.0
        %1068 = vmatpush2.msra.mxu0 0.0
        %1069 = vmatprep.subr.mxu0 0.0
        %1070 = vmatpush2.msra.mxu0 0.0
        %1071 = vmatprep.subr.mxu0 0.0
        %1072 = vmatpush2.msra.mxu0 0.0
        %1073 = vmatprep.subr.mxu0 0.0
        %1074 = vmatpush2.msra.mxu0 0.0
        %1075 = vmatprep.subr.mxu0 0.0
        %1076 = vmatpush2.msra.mxu0 0.0
        %1077 = vmatprep.subr.mxu0 0.0
        %1078 = vmatpush2.msra.mxu0 0.0
        %1079 = vmatprep.subr.mxu0 0.0
        %1080 = vmatpush2.msra.mxu0 0.0
        %1081 = vmatprep.subr.mxu0 0.0
        %1082 = vmatpush2.msra.mxu0 0.0
        %1083 = vmatprep.subr.mxu0 0.0
        %1084 = vmatpush2.msra.mxu0 0.0
        %1085 = vmatprep.subr.mxu0 0.0
        %1086 = vmatpush2.msra.mxu0 0.0
        %1087 = vmatprep.subr.mxu0 0.0
        %1088 = vmatpush2.msra.mxu0 0.0
        %1089 = vmatprep.subr.mxu0 0.0
        %1090 = vmatpush2.msra.mxu0 0.0
        %1091 = vmatprep.subr.mxu0 0.0
        %1092 = vmatpush2.msra.mxu0 0.0
        %1093 = vmatprep.mubr.f32.mxu0 0.0
        %1094 = vmatmul.mubr.f32.gmra.mxu0 %v1027
        %v1095 = vpop.f32.mrf.mxu0
        %v1096 = vadd.f32 0.0, %v1095
        %v1097 = vpop.f32.mrf.mxu0
        %1098 = vdwg.mxu0
        %v1099 = vld [vmem:[%s464] sm:$0xff]
        %1101 = vset.pattern.permute.xlu0 0
        %1102 = vperm.xlu0 %1101, %v1099
        %v1103 = vpop.permute.xlu0 %1102
        %v1105 = vmul.f32 %v1096, %v1103
        %1106 = vst [vmem:[%s449] sm:$0xff] %v1105
        %s1107 = sand.u32 %s277, 1
        %s1108 = scalar_lea.sflag [#allocation3], %s1107
        %s1109 = sand.u32 %s277, 1
        %s1110 = smul.addr %s1109, 8
        %s1111 = scalar_lea.vmem [#allocation2], %s1110
        %s1112 = sand.u32 %s303, 1
        %s1113 = scalar_lea.sflag [#allocation5], %s1112
        %s1114 = sand.u32 %s303, 1
        %s1115 = smul.addr %s1114, 8
        %s1116 = scalar_lea.vmem [#allocation4], %s1115
        // Predicated region
        $region61: #{attend_feedforward.1} parent=59 // pred_check
          %p1117 = pneg %p287
        $region62: #{attend_feedforward.1} parent=59 // pred_check_branch
          %1119 = sbr.rel (%p1117) target = $region64
        $region63: #{attend_feedforward.1} parent=59 // pred_region
          %s1121 = ssub.s32 128, 128
          %1122 = vsyncadd %s1108, %s1121
          %s1123 = smul.addr %s29, 128
          %s1124 = scalar_lea.hbm %s10, %s1123
          %s1126 = sshll.u32 %s1111, 4
          %s1127 = int_to_ptr.vmem [resolvable:$true] %s1126
          %1129 = dma.vmem_to_hbm [thread:$0]  %s1127, 128, %s1124, %s1108
        $region64: #{attend_feedforward.1} parent=59 // pred_fallthru
          _
        // Predicated region
        $region65: #{attend_feedforward.1} parent=59 // pred_check
          %p1130 = pneg %p313
        $region66: #{attend_feedforward.1} parent=59 // pred_check_branch
          %1132 = sbr.rel (%p1130) target = $region68
        $region67: #{attend_feedforward.1} parent=59 // pred_region
          %s1134 = ssub.s32 128, 128
          %1135 = vsyncadd %s1113, %s1134
          %s1136 = smul.addr %s29, 128
          %s1137 = scalar_lea.hbm %s11, %s1136
          %s1139 = sshll.u32 %s1116, 4
          %s1140 = int_to_ptr.vmem [resolvable:$true] %s1139
          %1142 = dma.vmem_to_hbm [thread:$0]  %s1140, 128, %s1137, %s1113
        $region68: #{attend_feedforward.1} parent=59 // pred_fallthru
          _
      $region60: #{attend_feedforward.1} parent=5 // pred_fallthru
        _
      %p1143 = scmp.le.s32.totalorder 2, %s24
      // Predicated region
      $region69: #{attend_feedforward.1} parent=5 // pred_check
        %p1144 = pneg %p1143
      $region70: #{attend_feedforward.1} parent=5 // pred_check_branch
        %1146 = sbr.rel (%p1144) target = $region72
      $region71: #{attend_feedforward.1} parent=5 // pred_region
        %s1147 = ssub.s32 %s24, 2
        // Predicated region
        $region73: #{attend_feedforward.1} parent=71 // pred_check
          %p1148 = pneg %p293
        $region74: #{attend_feedforward.1} parent=71 // pred_check_branch
          %1150 = sbr.rel (%p1148) target = $region76
        $region75: #{attend_feedforward.1} parent=71 // pred_region
          %s1151 = sand.u32 %s278, 1
          %s1152 = scalar_lea.sflag [#allocation3], %s1151
          %s1153 = sand.u32 %s278, 1
          %s1154 = smul.addr %s1153, 8
          %s1155 = scalar_lea.vmem [#allocation2], %s1154
          %1156 = dma.done %s1152, 128
        $region76: #{attend_feedforward.1} parent=71 // pred_fallthru
          _
        // Predicated region
        $region77: #{attend_feedforward.1} parent=71 // pred_check
          %p1157 = pneg %p319
        $region78: #{attend_feedforward.1} parent=71 // pred_check_branch
          %1159 = sbr.rel (%p1157) target = $region80
        $region79: #{attend_feedforward.1} parent=71 // pred_region
          %s1160 = sand.u32 %s304, 1
          %s1161 = scalar_lea.sflag [#allocation5], %s1160
          %s1162 = sand.u32 %s304, 1
          %s1163 = smul.addr %s1162, 8
          %s1164 = scalar_lea.vmem [#allocation4], %s1163
          %1165 = dma.done %s1161, 128
        $region80: #{attend_feedforward.1} parent=71 // pred_fallthru
          _
      $region72: #{attend_feedforward.1} parent=5 // pred_fallthru
        _
    $region6: #{attend_feedforward.1} parent=1 // loop_footer
      %s28 = sadd.s32 1, %s24
    $region7: #{attend_feedforward.1} parent=1 // loop_footer_branch
      %23 = sbr.rel target = $region3
    $region8: #{attend_feedforward.1} parent=1 // loop_exit
      _
    %1166 = vsyncpa [#allocation3], 1
    %s1167 = scalar_lea.sflag [#allocation3], 1
    %1168 = vsyncpa %s1167, 1
    %1169 = vsyncpa [#allocation5], 1
    %s1170 = scalar_lea.sflag [#allocation5], 1
    %1171 = vsyncpa %s1170, 1

</llo_original>
